<compile_context>
chip_gen: v6e
topology: v6e:2x2x1
jax: 0.10.0
libtpu: 0.0.40
codegen_flags: <defaults>
</compile_context>

<pallas_src>
import functools

import numpy as np
import jax
import jax.numpy as jnp
from jax import lax
from jax.experimental import pallas as pl
from jax.experimental.pallas import tpu as pltpu


# ----------------------------- Pallas kernel -------------------------------

def _ada_da_kernel(bf_ref, cf_ref, sf_ref, dy_ref, dx_ref, row_ref, col_ref,
                   x_ref, o_ref, *, flags, block_b, height, width):
    fb, fc, fs, ft = flags                       # static python bools
    H, W = height, width
    HW = H * W
    base = pl.program_id(0) * block_b            # first global image of this block

    def one_image(n, carry):
        b = base + n
        v = x_ref[n].astype(jnp.float32)         # (C, H*W), lane-dense

        # ---- brightness + contrast + saturation fused into one affine pass --
        # contrast:   (v - mean_all) * cf + mean_all
        # saturation: (v - mean_C)   * sf + mean_C   (per-pixel channel mean)
        # Fused:      v * (cf*sf) + offset, offset a (1, H*W) map.
        if fb or fc or fs:
            bfv = bf_ref[b] if fb else 0.0
            cfv = cf_ref[b] if fc else 1.0
            sfv = sf_ref[b] if fs else 1.0
            if fc or fs:
                mc0 = jnp.mean(v, axis=0, keepdims=True)     # (1, H*W) channel mean
                if fb:
                    mc0 = mc0 + bfv                          # mean of brightened img
                m_all = jnp.mean(mc0)                        # global mean (scalar)
                m_c1 = (mc0 - m_all) * cfv + m_all           # channel mean post-contrast
                scale = cfv * sfv
                offset = (m_all * (1.0 - cfv) - m_c1) * sfv + m_c1
                if fb:
                    offset = offset + bfv * scale
                v = v * scale + offset                       # single full-tensor pass
            else:
                v = v + bfv                                  # brightness only

        # ---- translation: torch pads by 1 and gathers clamped (i+dy, j+dx),
        #      which equals out[i,j] = v[i+dy-1, j+dx-1] when in range, else 0.
        #      In the flattened (C, H*W) view both shifts collapse into a single
        #      dynamic lane-roll; wrapped-in values are killed by the mask. -----
        if ft:
            sy = dy_ref[b] - 1
            sx = dx_ref[b] - 1
            shift = (-(sx + sy * W)) % HW                    # scalar in [0, HW)
            t = pltpu.roll(v, shift, 1)
            ri = row_ref[...] + sy                           # (1, H*W)
            ci = col_ref[...] + sx
            valid = (ri >= 0) & (ri < H) & (ci >= 0) & (ci < W)
            v = jnp.where(valid, t, 0.0)

        o_ref[n] = v.astype(o_ref.dtype)
        return carry

    lax.fori_loop(0, block_b, one_image, 0, unroll=block_b <= 8)


def _pick_block_b(batch, c, hw, itemsize, target_bytes=2 << 20):
    """Largest divisor of `batch` whose (Bt, C, H*W) block stays <= target."""
    best = 1
    for cand in range(1, batch + 1):
        if batch % cand == 0 and cand * c * hw * itemsize <= target_bytes:
            best = cand
    return best


def adaptive_da_pallas(x, flags, bf, cf, sf, dy, dx):
    """Apply the (statically selected) augmentations to x of shape (B, C, H, W)."""
    B, C, H, W = x.shape
    HW = H * W
    flags = tuple(bool(int(f)) for f in np.asarray(flags).reshape(-1))
    assert len(flags) == 4

    x_flat = x.reshape(B, C, HW)                 # lane-dense view for the kernel
    block_b = _pick_block_b(B, C, HW, x.dtype.itemsize)

    # Static row / column index maps for the translation validity mask
    # (avoids in-kernel vector integer div/mod).
    k = np.arange(HW, dtype=np.int32)
    row_map = jnp.asarray((k // W).reshape(1, HW))
    col_map = jnp.asarray((k % W).reshape(1, HW))

    kernel = functools.partial(_ada_da_kernel, flags=flags, block_b=block_b,
                               height=H, width=W)
    smem = pl.BlockSpec(memory_space=pltpu.MemorySpace.SMEM)
    out = pl.pallas_call(
        kernel,
        out_shape=jax.ShapeDtypeStruct((B, C, HW), x.dtype),
        grid=(B // block_b,),
        in_specs=[smem, smem, smem, smem, smem,              # bf, cf, sf, dy, dx
                  pl.BlockSpec((1, HW), lambda g: (0, 0)),   # row_map
                  pl.BlockSpec((1, HW), lambda g: (0, 0)),   # col_map
                  pl.BlockSpec((block_b, C, HW), lambda g: (g, 0, 0))],
        out_specs=pl.BlockSpec((block_b, C, HW), lambda g: (g, 0, 0)),
        compiler_params=pltpu.CompilerParams(
            dimension_semantics=("parallel",),               # megacore on v7x
            vmem_limit_bytes=32 * 1024 * 1024),              # fits v7x's 64 MiB VMEM
    )(bf, cf, sf, dy, dx, row_map, col_map, x_flat)
    return out.reshape(B, C, H, W)


# ----------------------------- module wrapper -------------------------------

class AdaptiveDA:
    """JAX/Pallas port of gan_modules.gan_utils.AdaptiveDA (forward pass)."""

    def __init__(self, frequency=4, threshold=0.6):
        self.prob = 0.0
        self.threshold = threshold
        self.frequency = frequency
        self.n = 0
        self._epoch = 0
        self._batch_size = 0
        self.last_params = None

    @property
    def batch_size(self):
        return self._batch_size

    @batch_size.setter
    def batch_size(self, value):
        self._batch_size = value

    @property
    def epoch(self):
        return self._epoch

    @epoch.setter
    def epoch(self, value):
        self._epoch = value

    def adjust_p(self, real_logit):
        # TODO(synk): host-side training-state bookkeeping; kept in plain JAX/numpy.
        if self.n != self.frequency:
            return None
        rt = float(jnp.mean(jnp.sign(real_logit)))
        self.prob += np.sign(rt - self.threshold) * (
            self._epoch * self._batch_size) / (self._batch_size * 1000)
        self.prob = float(np.clip(self.prob, 0.0, 1.0))
        self.n = 0

    def forward(self, x, key, target=False):
        if target:
            self.n += 1
        B, _, H, W = x.shape
        # Host-side Bernoulli choice of which augmentations apply (as in torch);
        # the kernel is specialized on these 4 static flags.
        flags = np.random.choice(
            [0, 1], size=4, p=[1.0 - self.prob, self.prob]).astype(np.int32)
        k1, k2, k3, k4, k5 = jax.random.split(key, 5)
        bf = jax.random.uniform(k1, (B,), jnp.float32) / 4.0          # [0, .25)
        cf = jax.random.uniform(k2, (B,), jnp.float32) + 0.5          # [.5,1.5)
        sf = jax.random.uniform(k3, (B,), jnp.float32) * 2.0          # [0, 2)
        dy = jax.random.randint(k4, (B,), -(H // 8), H // 8, dtype=jnp.int32)
        dx = jax.random.randint(k5, (B,), -(W // 8), W // 8, dtype=jnp.int32)
        self.last_params = (flags, bf, cf, sf, dy, dx)
        return adaptive_da_pallas(x, flags, bf, cf, sf, dy, dx)


# --------------------------- pure-JAX reference -----------------------------

def reference_forward(x, flags, bf, cf, sf, dy, dx):
    v = x
    if flags[0]:
        v = v + bf[:, None, None, None]
    if flags[1]:
        m = jnp.mean(v, axis=(1, 2, 3), keepdims=True)
        v = (v - m) * cf[:, None, None, None] + m
    if flags[2]:
        m = jnp.mean(v, axis=1, keepdims=True)
        v = (v - m) * sf[:, None, None, None] + m
    if flags[3]:
        B, C, H, W = v.shape
        pad = jnp.pad(v, ((0, 0), (0, 0), (1, 1), (1, 1)))
        iy = jnp.clip(jnp.arange(H)[None, :, None] + dy[:, None, None], 0, H + 1)
        ix = jnp.clip(jnp.arange(W)[None, None, :] + dx[:, None, None], 0, W + 1)
        ib = jnp.arange(B)[:, None, None]
        padp = jnp.transpose(pad, (0, 2, 3, 1))            # (B, H+2, W+2, C)
        gathered = padp[ib, iy, ix]                        # (B, H, W, C)
        v = jnp.transpose(gathered, (0, 3, 1, 2))
    return v


# --------------------------------- main -------------------------------------

if __name__ == "__main__":
    np.random.seed(0)
    key = jax.random.PRNGKey(0)
    kx, kaug = jax.random.split(key)

    B, C, H, W = 2, 4, 16, 16
    x = jax.random.normal(kx, (B, C, H, W), dtype=jnp.float32)

    da = AdaptiveDA(frequency=4, threshold=0.6)
    da.prob = 1.0   # force every augmentation on so the full kernel path runs

    out = da.forward(x, kaug, target=True)
    out = jax.block_until_ready(out)

    flags, bf, cf, sf, dy, dx = da.last_params
    ref = reference_forward(x, flags, bf, cf, sf, dy, dx)
    np.testing.assert_allclose(np.asarray(out), np.asarray(ref),
                               rtol=1e-5, atol=1e-5)

    # Exercise a few other static-flag specializations (copy path, fused
    # brightness+saturation, translation-only).
    for extra in ((0, 0, 0, 0), (1, 0, 1, 0), (0, 0, 0, 1)):
        ef = np.array(extra, np.int32)
        out2 = jax.block_until_ready(
            adaptive_da_pallas(x, ef, bf, cf, sf, dy, dx))
        ref2 = reference_forward(x, ef, bf, cf, sf, dy, dx)
        np.testing.assert_allclose(np.asarray(out2), np.asarray(ref2),
                                   rtol=1e-5, atol=1e-5)

    print("KERNEL_OK")
</pallas_src>

<mosaic_0001>
module attributes {stable_mosaic.version = 11 : i64} {
  func.func @_ada_da_kernel(%arg0: i32, %arg1: memref<2xf32, #tpu.memory_space<smem>>, %arg2: memref<2xf32, #tpu.memory_space<smem>>, %arg3: memref<2xf32, #tpu.memory_space<smem>>, %arg4: memref<2xi32, #tpu.memory_space<smem>>, %arg5: memref<2xi32, #tpu.memory_space<smem>>, %arg6: memref<1x256xi32, #tpu.memory_space<vmem>>, %arg7: memref<1x256xi32, #tpu.memory_space<vmem>>, %arg8: memref<2x4x256xf32, #tpu.memory_space<vmem>>, %arg9: memref<2x4x256xf32, #tpu.memory_space<vmem>>) attributes {dimension_semantics = [#tpu.dimension_semantics<parallel>], iteration_bounds = array<i64: 1>, scalar_prefetch = 0 : i64, scratch_operands = 0 : i64, tpu.core_type = #tpu.core_type<tc>, window_params = [{transform_indices = @transform_0, window_bounds = array<i64: 2>}, {transform_indices = @transform_1, window_bounds = array<i64: 2>}, {transform_indices = @transform_2, window_bounds = array<i64: 2>}, {transform_indices = @transform_3, window_bounds = array<i64: 2>}, {transform_indices = @transform_4, window_bounds = array<i64: 2>}, {pipeline_mode = #tpu.pipeline_mode<synchronous>, transform_indices = @transform_5, window_bounds = array<i64: 1, 256>}, {pipeline_mode = #tpu.pipeline_mode<synchronous>, transform_indices = @transform_6, window_bounds = array<i64: 1, 256>}, {transform_indices = @transform_7, window_bounds = array<i64: 2, 4, 256>}, {transform_indices = @transform_8, window_bounds = array<i64: 2, 4, 256>}]} {
    %c2_i32 = arith.constant 2 : i32
    %0 = arith.muli %arg0, %c2_i32 : i32
    %c0_i32 = arith.constant 0 : i32
    %1 = arith.addi %0, %c0_i32 : i32
    %2 = arith.index_cast %c0_i32 : i32 to index
    %c0 = arith.constant 0 : index
    %c0_0 = arith.constant 0 : index
    %3 = vector.load %arg8[%2, %c0, %c0_0] : memref<2x4x256xf32, #tpu.memory_space<vmem>>, vector<1x4x256xf32>
    %4 = vector.shape_cast %3 : vector<1x4x256xf32> to vector<4x256xf32>
    %5 = arith.index_cast %1 : i32 to index
    %6 = memref.load %arg1[%5] : memref<2xf32, #tpu.memory_space<smem>>
    %7 = arith.index_cast %1 : i32 to index
    %8 = memref.load %arg2[%7] : memref<2xf32, #tpu.memory_space<smem>>
    %9 = arith.index_cast %1 : i32 to index
    %10 = memref.load %arg3[%9] : memref<2xf32, #tpu.memory_space<smem>>
    %cst = arith.constant dense<0.000000e+00> : vector<256xf32>
    %11 = vector.multi_reduction <add>, %4, %cst [0] : vector<4x256xf32> to vector<256xf32>
    %12 = vector.shape_cast %11 : vector<256xf32> to vector<1x256xf32>
    %cst_1 = arith.constant 4.000000e+00 : f32
    %13 = vector.broadcast %cst_1 : f32 to vector<1x256xf32>
    %14 = arith.divf %12, %13 : vector<1x256xf32>
    %15 = vector.broadcast %6 : f32 to vector<1x256xf32>
    %16 = arith.addf %14, %15 : vector<1x256xf32>
    %17 = vector.shape_cast %16 : vector<1x256xf32> to vector<1x1x256xf32>
    %cst_2 = arith.constant dense<0.000000e+00> : vector<1xf32>
    %18 = vector.multi_reduction <add>, %17, %cst_2 [1, 2] : vector<1x1x256xf32> to vector<1xf32>
    %19 = vector.shape_cast %18 : vector<1xf32> to vector<1x1x1xf32>
    %20 = vector.extract %19[0, 0, 0] : f32 from vector<1x1x1xf32>
    %cst_3 = arith.constant 2.560000e+02 : f32
    %21 = arith.divf %20, %cst_3 : f32
    %22 = vector.broadcast %21 : f32 to vector<1x256xf32>
    %23 = arith.subf %16, %22 : vector<1x256xf32>
    %24 = vector.broadcast %8 : f32 to vector<1x256xf32>
    %25 = arith.mulf %23, %24 : vector<1x256xf32>
    %26 = vector.broadcast %21 : f32 to vector<1x256xf32>
    %27 = arith.addf %25, %26 : vector<1x256xf32>
    %28 = arith.mulf %8, %10 : f32
    %cst_4 = arith.constant 1.000000e+00 : f32
    %29 = arith.subf %cst_4, %8 : f32
    %30 = arith.mulf %21, %29 : f32
    %31 = vector.broadcast %30 : f32 to vector<1x256xf32>
    %32 = arith.subf %31, %27 : vector<1x256xf32>
    %33 = vector.broadcast %10 : f32 to vector<1x256xf32>
    %34 = arith.mulf %32, %33 : vector<1x256xf32>
    %35 = arith.addf %34, %27 : vector<1x256xf32>
    %36 = arith.mulf %6, %28 : f32
    %37 = vector.broadcast %36 : f32 to vector<1x256xf32>
    %38 = arith.addf %35, %37 : vector<1x256xf32>
    %39 = vector.broadcast %28 : f32 to vector<4x256xf32>
    %40 = arith.mulf %4, %39 : vector<4x256xf32>
    %41 = vector.broadcast %38 : vector<1x256xf32> to vector<4x256xf32>
    %42 = arith.addf %40, %41 : vector<4x256xf32>
    %43 = arith.index_cast %1 : i32 to index
    %44 = memref.load %arg4[%43] : memref<2xi32, #tpu.memory_space<smem>>
    %c1_i32 = arith.constant 1 : i32
    %45 = arith.subi %44, %c1_i32 : i32
    %46 = arith.index_cast %1 : i32 to index
    %47 = memref.load %arg5[%46] : memref<2xi32, #tpu.memory_space<smem>>
    %c1_i32_5 = arith.constant 1 : i32
    %48 = arith.subi %47, %c1_i32_5 : i32
    %c16_i32 = arith.constant 16 : i32
    %49 = arith.muli %45, %c16_i32 : i32
    %50 = arith.addi %48, %49 : i32
    %c0_i32_6 = arith.constant 0 : i32
    %51 = arith.subi %c0_i32_6, %50 : i32
    %c256_i32 = arith.constant 256 : i32
    %c0_i32_7 = arith.constant 0 : i32
    %52 = arith.cmpi eq, %c256_i32, %c0_i32_7 : i32
    %c1_i32_8 = arith.constant 1 : i32
    %53 = arith.select %52, %c1_i32_8, %c256_i32 : i32
    %54 = arith.remsi %51, %53 : i32
    %c0_i32_9 = arith.constant 0 : i32
    %55 = arith.cmpi ne, %54, %c0_i32_9 : i32
    %c0_i32_10 = arith.constant 0 : i32
    %56 = arith.cmpi slt, %54, %c0_i32_10 : i32
    %c0_i32_11 = arith.constant 0 : i32
    %57 = arith.cmpi slt, %53, %c0_i32_11 : i32
    %58 = arith.xori %56, %57 : i1
    %59 = arith.andi %58, %55 : i1
    %60 = arith.addi %54, %53 : i32
    %61 = arith.select %59, %60, %54 : i32
    %62 = tpu.dynamic_rotate %42 by %61 dim 1 : vector<4x256xf32>, i32 -> vector<4x256xf32>
    %c0_12 = arith.constant 0 : index
    %c0_13 = arith.constant 0 : index
    %63 = vector.load %arg6[%c0_12, %c0_13] : memref<1x256xi32, #tpu.memory_space<vmem>>, vector<1x256xi32>
    %64 = vector.broadcast %45 : i32 to vector<1x256xi32>
    %65 = arith.addi %63, %64 : vector<1x256xi32>
    %c0_14 = arith.constant 0 : index
    %c0_15 = arith.constant 0 : index
    %66 = vector.load %arg7[%c0_14, %c0_15] : memref<1x256xi32, #tpu.memory_space<vmem>>, vector<1x256xi32>
    %67 = vector.broadcast %48 : i32 to vector<1x256xi32>
    %68 = arith.addi %66, %67 : vector<1x256xi32>
    %c0_i32_16 = arith.constant 0 : i32
    %69 = vector.broadcast %c0_i32_16 : i32 to vector<1x256xi32>
    %70 = arith.cmpi sge, %65, %69 : vector<1x256xi32>
    %c16_i32_17 = arith.constant 16 : i32
    %71 = vector.broadcast %c16_i32_17 : i32 to vector<1x256xi32>
    %72 = arith.cmpi slt, %65, %71 : vector<1x256xi32>
    %73 = arith.andi %70, %72 : vector<1x256xi1>
    %c0_i32_18 = arith.constant 0 : i32
    %74 = vector.broadcast %c0_i32_18 : i32 to vector<1x256xi32>
    %75 = arith.cmpi sge, %68, %74 : vector<1x256xi32>
    %76 = arith.andi %73, %75 : vector<1x256xi1>
    %c16_i32_19 = arith.constant 16 : i32
    %77 = vector.broadcast %c16_i32_19 : i32 to vector<1x256xi32>
    %78 = arith.cmpi slt, %68, %77 : vector<1x256xi32>
    %79 = arith.andi %76, %78 : vector<1x256xi1>
    %cst_20 = arith.constant 0.000000e+00 : f32
    %80 = vector.shape_cast %79 : vector<1x256xi1> to vector<1x256xi1>
    %81 = vector.broadcast %80 : vector<1x256xi1> to vector<4x256xi1>
    %82 = vector.broadcast %cst_20 : f32 to vector<4x256xf32>
    %83 = arith.select %81, %62, %82 : vector<4x256xi1>, vector<4x256xf32>
    %84 = arith.index_cast %c0_i32 : i32 to index
    %c0_21 = arith.constant 0 : index
    %c0_22 = arith.constant 0 : index
    %85 = vector.load %arg9[%84, %c0_21, %c0_22] : memref<2x4x256xf32, #tpu.memory_space<vmem>>, vector<1x4x256xf32>
    %86 = vector.shape_cast %85 : vector<1x4x256xf32> to vector<4x256xf32>
    %87 = vector.shape_cast %83 : vector<4x256xf32> to vector<1x4x256xf32>
    tpu.vector_store %arg9[%84, %c0_21, %c0_22], %87 {strides = array<i32>} : memref<2x4x256xf32, #tpu.memory_space<vmem>>, vector<1x4x256xf32>,
    %c1_i32_23 = arith.constant 1 : i32
    %88 = arith.addi %0, %c1_i32_23 : i32
    %89 = arith.index_cast %c1_i32_23 : i32 to index
    %c0_24 = arith.constant 0 : index
    %c0_25 = arith.constant 0 : index
    %90 = vector.load %arg8[%89, %c0_24, %c0_25] : memref<2x4x256xf32, #tpu.memory_space<vmem>>, vector<1x4x256xf32>
    %91 = vector.shape_cast %90 : vector<1x4x256xf32> to vector<4x256xf32>
    %92 = arith.index_cast %88 : i32 to index
    %93 = memref.load %arg1[%92] : memref<2xf32, #tpu.memory_space<smem>>
    %94 = arith.index_cast %88 : i32 to index
    %95 = memref.load %arg2[%94] : memref<2xf32, #tpu.memory_space<smem>>
    %96 = arith.index_cast %88 : i32 to index
    %97 = memref.load %arg3[%96] : memref<2xf32, #tpu.memory_space<smem>>
    %cst_26 = arith.constant dense<0.000000e+00> : vector<256xf32>
    %98 = vector.multi_reduction <add>, %91, %cst_26 [0] : vector<4x256xf32> to vector<256xf32>
    %99 = vector.shape_cast %98 : vector<256xf32> to vector<1x256xf32>
    %cst_27 = arith.constant 4.000000e+00 : f32
    %100 = vector.broadcast %cst_27 : f32 to vector<1x256xf32>
    %101 = arith.divf %99, %100 : vector<1x256xf32>
    %102 = vector.broadcast %93 : f32 to vector<1x256xf32>
    %103 = arith.addf %101, %102 : vector<1x256xf32>
    %104 = vector.shape_cast %103 : vector<1x256xf32> to vector<1x1x256xf32>
    %cst_28 = arith.constant dense<0.000000e+00> : vector<1xf32>
    %105 = vector.multi_reduction <add>, %104, %cst_28 [1, 2] : vector<1x1x256xf32> to vector<1xf32>
    %106 = vector.shape_cast %105 : vector<1xf32> to vector<1x1x1xf32>
    %107 = vector.extract %106[0, 0, 0] : f32 from vector<1x1x1xf32>
    %cst_29 = arith.constant 2.560000e+02 : f32
    %108 = arith.divf %107, %cst_29 : f32
    %109 = vector.broadcast %108 : f32 to vector<1x256xf32>
    %110 = arith.subf %103, %109 : vector<1x256xf32>
    %111 = vector.broadcast %95 : f32 to vector<1x256xf32>
    %112 = arith.mulf %110, %111 : vector<1x256xf32>
    %113 = vector.broadcast %108 : f32 to vector<1x256xf32>
    %114 = arith.addf %112, %113 : vector<1x256xf32>
    %115 = arith.mulf %95, %97 : f32
    %cst_30 = arith.constant 1.000000e+00 : f32
    %116 = arith.subf %cst_30, %95 : f32
    %117 = arith.mulf %108, %116 : f32
    %118 = vector.broadcast %117 : f32 to vector<1x256xf32>
    %119 = arith.subf %118, %114 : vector<1x256xf32>
    %120 = vector.broadcast %97 : f32 to vector<1x256xf32>
    %121 = arith.mulf %119, %120 : vector<1x256xf32>
    %122 = arith.addf %121, %114 : vector<1x256xf32>
    %123 = arith.mulf %93, %115 : f32
    %124 = vector.broadcast %123 : f32 to vector<1x256xf32>
    %125 = arith.addf %122, %124 : vector<1x256xf32>
    %126 = vector.broadcast %115 : f32 to vector<4x256xf32>
    %127 = arith.mulf %91, %126 : vector<4x256xf32>
    %128 = vector.broadcast %125 : vector<1x256xf32> to vector<4x256xf32>
    %129 = arith.addf %127, %128 : vector<4x256xf32>
    %130 = arith.index_cast %88 : i32 to index
    %131 = memref.load %arg4[%130] : memref<2xi32, #tpu.memory_space<smem>>
    %c1_i32_31 = arith.constant 1 : i32
    %132 = arith.subi %131, %c1_i32_31 : i32
    %133 = arith.index_cast %88 : i32 to index
    %134 = memref.load %arg5[%133] : memref<2xi32, #tpu.memory_space<smem>>
    %c1_i32_32 = arith.constant 1 : i32
    %135 = arith.subi %134, %c1_i32_32 : i32
    %c16_i32_33 = arith.constant 16 : i32
    %136 = arith.muli %132, %c16_i32_33 : i32
    %137 = arith.addi %135, %136 : i32
    %c0_i32_34 = arith.constant 0 : i32
    %138 = arith.subi %c0_i32_34, %137 : i32
    %c256_i32_35 = arith.constant 256 : i32
    %c0_i32_36 = arith.constant 0 : i32
    %139 = arith.cmpi eq, %c256_i32_35, %c0_i32_36 : i32
    %c1_i32_37 = arith.constant 1 : i32
    %140 = arith.select %139, %c1_i32_37, %c256_i32_35 : i32
    %141 = arith.remsi %138, %140 : i32
    %c0_i32_38 = arith.constant 0 : i32
    %142 = arith.cmpi ne, %141, %c0_i32_38 : i32
    %c0_i32_39 = arith.constant 0 : i32
    %143 = arith.cmpi slt, %141, %c0_i32_39 : i32
    %c0_i32_40 = arith.constant 0 : i32
    %144 = arith.cmpi slt, %140, %c0_i32_40 : i32
    %145 = arith.xori %143, %144 : i1
    %146 = arith.andi %145, %142 : i1
    %147 = arith.addi %141, %140 : i32
    %148 = arith.select %146, %147, %141 : i32
    %149 = tpu.dynamic_rotate %129 by %148 dim 1 : vector<4x256xf32>, i32 -> vector<4x256xf32>
    %c0_41 = arith.constant 0 : index
    %c0_42 = arith.constant 0 : index
    %150 = vector.load %arg6[%c0_41, %c0_42] : memref<1x256xi32, #tpu.memory_space<vmem>>, vector<1x256xi32>
    %151 = vector.broadcast %132 : i32 to vector<1x256xi32>
    %152 = arith.addi %150, %151 : vector<1x256xi32>
    %c0_43 = arith.constant 0 : index
    %c0_44 = arith.constant 0 : index
    %153 = vector.load %arg7[%c0_43, %c0_44] : memref<1x256xi32, #tpu.memory_space<vmem>>, vector<1x256xi32>
    %154 = vector.broadcast %135 : i32 to vector<1x256xi32>
    %155 = arith.addi %153, %154 : vector<1x256xi32>
    %c0_i32_45 = arith.constant 0 : i32
    %156 = vector.broadcast %c0_i32_45 : i32 to vector<1x256xi32>
    %157 = arith.cmpi sge, %152, %156 : vector<1x256xi32>
    %c16_i32_46 = arith.constant 16 : i32
    %158 = vector.broadcast %c16_i32_46 : i32 to vector<1x256xi32>
    %159 = arith.cmpi slt, %152, %158 : vector<1x256xi32>
    %160 = arith.andi %157, %159 : vector<1x256xi1>
    %c0_i32_47 = arith.constant 0 : i32
    %161 = vector.broadcast %c0_i32_47 : i32 to vector<1x256xi32>
    %162 = arith.cmpi sge, %155, %161 : vector<1x256xi32>
    %163 = arith.andi %160, %162 : vector<1x256xi1>
    %c16_i32_48 = arith.constant 16 : i32
    %164 = vector.broadcast %c16_i32_48 : i32 to vector<1x256xi32>
    %165 = arith.cmpi slt, %155, %164 : vector<1x256xi32>
    %166 = arith.andi %163, %165 : vector<1x256xi1>
    %cst_49 = arith.constant 0.000000e+00 : f32
    %167 = vector.shape_cast %166 : vector<1x256xi1> to vector<1x256xi1>
    %168 = vector.broadcast %167 : vector<1x256xi1> to vector<4x256xi1>
    %169 = vector.broadcast %cst_49 : f32 to vector<4x256xf32>
    %170 = arith.select %168, %149, %169 : vector<4x256xi1>, vector<4x256xf32>
    %171 = arith.index_cast %c1_i32_23 : i32 to index
    %c0_50 = arith.constant 0 : index
    %c0_51 = arith.constant 0 : index
    %172 = vector.load %arg9[%171, %c0_50, %c0_51] : memref<2x4x256xf32, #tpu.memory_space<vmem>>, vector<1x4x256xf32>
    %173 = vector.shape_cast %172 : vector<1x4x256xf32> to vector<4x256xf32>
    %174 = vector.shape_cast %170 : vector<4x256xf32> to vector<1x4x256xf32>
    tpu.vector_store %arg9[%171, %c0_50, %c0_51], %174 {strides = array<i32>} : memref<2x4x256xf32, #tpu.memory_space<vmem>>, vector<1x4x256xf32>,
    %c2_i32_52 = arith.constant 2 : i32
    return
  }
  func.func @transform_0(%arg0: i32) -> i32 {
    %c0_i32 = arith.constant 0 : i32
    %c0_i32_0 = arith.constant 0 : i32
    return %c0_i32 : i32
  }
  func.func @transform_1(%arg0: i32) -> i32 {
    %c0_i32 = arith.constant 0 : i32
    %c0_i32_0 = arith.constant 0 : i32
    return %c0_i32 : i32
  }
  func.func @transform_2(%arg0: i32) -> i32 {
    %c0_i32 = arith.constant 0 : i32
    %c0_i32_0 = arith.constant 0 : i32
    return %c0_i32 : i32
  }
  func.func @transform_3(%arg0: i32) -> i32 {
    %c0_i32 = arith.constant 0 : i32
    %c0_i32_0 = arith.constant 0 : i32
    return %c0_i32 : i32
  }
  func.func @transform_4(%arg0: i32) -> i32 {
    %c0_i32 = arith.constant 0 : i32
    %c0_i32_0 = arith.constant 0 : i32
    return %c0_i32 : i32
  }
  func.func @transform_5(%arg0: i32) -> (i32, i32) {
    %c0_i32 = arith.constant 0 : i32
    %c0_i32_0 = arith.constant 0 : i32
    %c0_i32_1 = arith.constant 0 : i32
    return %c0_i32, %c0_i32_0 : i32, i32
  }
  func.func @transform_6(%arg0: i32) -> (i32, i32) {
    %c0_i32 = arith.constant 0 : i32
    %c0_i32_0 = arith.constant 0 : i32
    %c0_i32_1 = arith.constant 0 : i32
    return %c0_i32, %c0_i32_0 : i32, i32
  }
  func.func @transform_7(%arg0: i32) -> (i32, i32, i32) {
    %c0_i32 = arith.constant 0 : i32
    %c0_i32_0 = arith.constant 0 : i32
    %c0_i32_1 = arith.constant 0 : i32
    return %arg0, %c0_i32, %c0_i32_0 : i32, i32, i32
  }
  func.func @transform_8(%arg0: i32) -> (i32, i32, i32) {
    %c0_i32 = arith.constant 0 : i32
    %c0_i32_0 = arith.constant 0 : i32
    %c0_i32_1 = arith.constant 0 : i32
    return %arg0, %c0_i32, %c0_i32_0 : i32, i32, i32
  }
}

</mosaic_0001>

<llo_original>
// kernel: tpu_custom_call.1
$region0: #{tpu_custom_call.1}
  #allocation0 [shape = 'u32[]', space=smem, size = 0x4, offset = 0x4, fixed_abs, tag = 'smem constant byte address 0x4 - core index']
  #allocation1 [shape = 'u32[144,128]{1,0:T(1,128)}', space=vmem, size = 0x12000, scoped, tag = 'internal scratch']
  %s0 = inlined_call_operand.hbm [shape: f32[2], index: 0, kind: input, shape index: {}]
  %s1 = inlined_call_operand.vmem [shape: f32[2], index: 1, kind: input, shape index: {}]
  %s2 = inlined_call_operand.hbm [shape: f32[2], index: 2, kind: input, shape index: {}]
  %s3 = inlined_call_operand.hbm [shape: s32[2], index: 3, kind: input, shape index: {}]
  %s4 = inlined_call_operand.vmem [shape: s32[2], index: 4, kind: input, shape index: {}]
  %s5 = inlined_call_operand.vmem [shape: s32[1,256], index: 5, kind: input, shape index: {}]
  %s6 = inlined_call_operand.vmem [shape: s32[1,256], index: 6, kind: input, shape index: {}]
  %s7 = inlined_call_operand.hbm [shape: f32[2,4,256], index: 7, kind: input, shape index: {}]
  %s8 = inlined_call_operand.hbm [shape: f32[2,4,256], index: 8, kind: output, shape index: {}]
  %s9 = sld [smem:[#allocation0]]
  $region66: #{tpu_custom_call.1} parent=0
    _
  %s11 = ssub.s32 1, %s9
  %s12 = scalar_select 0, %s11, %s9
  $region1: #{tpu_custom_call.1} parent=0
    #allocation2 [shape = 'u8[512]{0}', space=smem, size = 0x200, scoped, tag = 'input window, operand 0, single buffered']
    #allocation3 [shape = 's32[1]{0}', space=sflag, size = 0x4, scoped, tag = 'scoped memory for tpu_custom_call.1']
    #allocation4 [shape = 's32[1]{0}', space=sflag, size = 0x4, scoped, tag = 'scoped memory for tpu_custom_call.1']
    #allocation5 [shape = 's32[1]{0}', space=sflag, size = 0x4, scoped, tag = 'scoped memory for tpu_custom_call.1']
    #allocation6 [shape = 's32[1]{0}', space=sflag, size = 0x4, scoped, tag = 'scoped memory for tpu_custom_call.1']
    #allocation7 [shape = 'u8[512]{0}', space=smem, size = 0x200, scoped, tag = 'input window, operand 1, single buffered']
    #allocation8 [shape = 'u8[512]{0}', space=smem, size = 0x200, scoped, tag = 'input window, operand 2, single buffered']
    #allocation9 [shape = 's32[1]{0}', space=sflag, size = 0x4, scoped, tag = 'scoped memory for tpu_custom_call.1']
    #allocation10 [shape = 'u8[512]{0}', space=smem, size = 0x200, scoped, tag = 'input window, operand 3, single buffered']
    #allocation11 [shape = 'u8[512]{0}', space=smem, size = 0x200, scoped, tag = 'input window, operand 4, single buffered']
    #allocation12 [shape = 's32[1]{0}', space=sflag, size = 0x4, scoped, tag = 'scoped memory for tpu_custom_call.1']
    #allocation13 [shape = 'u8[8192]{0}', space=vmem, size = 0x2000, scoped, tag = 'input window, operand 7, single buffered']
    #allocation14 [shape = 'u8[8192]{0}', space=vmem, size = 0x2000, scoped, tag = 'output window, operand 0, single buffered']
    %13 = vsyncpa [#allocation5], 0
    %14 = vsyncpa [#allocation6], 0
    %15 = vsyncpa [#allocation9], 0
    %16 = vsyncpa [#allocation12], 0
    %17 = vsyncpa [#allocation3], 0
    %18 = vsyncpa [#allocation4], 0
    // Predicated region
    $region2: #{tpu_custom_call.1} parent=1 // pred_check
      _
    $region3: #{tpu_custom_call.1} parent=1 // pred_check_branch
      %20 = sbr.rel (0) target = $region5
    $region4: #{tpu_custom_call.1} parent=1 // pred_region
      %s22 = ssub.s32 16, 16
      %23 = vsyncadd [#allocation5], %s22
      %26 = dma.hbm_to_smem %s0, 16, [#allocation2], [#allocation5]
    $region5: #{tpu_custom_call.1} parent=1 // pred_fallthru
      _
    // Predicated region
    $region6: #{tpu_custom_call.1} parent=1 // pred_check
      _
    $region7: #{tpu_custom_call.1} parent=1 // pred_check_branch
      %28 = sbr.rel (0) target = $region9
    $region8: #{tpu_custom_call.1} parent=1 // pred_region
      %s30 = ssub.s32 16, 16
      %31 = vsyncadd [#allocation6], %s30
      %s33 = sshll.u32 %s1, 4
      %s34 = int_to_ptr.vmem [resolvable:$true] %s33
      %36 = dma.vmem_to_smem %s34, 16, [#allocation7], [#allocation6]
    $region9: #{tpu_custom_call.1} parent=1 // pred_fallthru
      _
    // Predicated region
    $region10: #{tpu_custom_call.1} parent=1 // pred_check
      _
    $region11: #{tpu_custom_call.1} parent=1 // pred_check_branch
      %38 = sbr.rel (0) target = $region13
    $region12: #{tpu_custom_call.1} parent=1 // pred_region
      %s40 = ssub.s32 16, 16
      %41 = vsyncadd [#allocation9], %s40
      %44 = dma.hbm_to_smem %s2, 16, [#allocation8], [#allocation9]
    $region13: #{tpu_custom_call.1} parent=1 // pred_fallthru
      _
    // Predicated region
    $region14: #{tpu_custom_call.1} parent=1 // pred_check
      _
    $region15: #{tpu_custom_call.1} parent=1 // pred_check_branch
      %46 = sbr.rel (0) target = $region17
    $region16: #{tpu_custom_call.1} parent=1 // pred_region
      %s48 = ssub.s32 16, 16
      %49 = vsyncadd [#allocation9], %s48
      %52 = dma.hbm_to_smem %s3, 16, [#allocation10], [#allocation9]
    $region17: #{tpu_custom_call.1} parent=1 // pred_fallthru
      _
    // Predicated region
    $region18: #{tpu_custom_call.1} parent=1 // pred_check
      _
    $region19: #{tpu_custom_call.1} parent=1 // pred_check_branch
      %54 = sbr.rel (0) target = $region21
    $region20: #{tpu_custom_call.1} parent=1 // pred_region
      %s56 = ssub.s32 16, 16
      %57 = vsyncadd [#allocation12], %s56
      %s59 = sshll.u32 %s4, 4
      %s60 = int_to_ptr.vmem [resolvable:$true] %s59
      %62 = dma.vmem_to_smem %s60, 16, [#allocation11], [#allocation12]
    $region21: #{tpu_custom_call.1} parent=1 // pred_fallthru
      _
    // Predicated region
    $region22: #{tpu_custom_call.1} parent=1 // pred_check
      _
    $region23: #{tpu_custom_call.1} parent=1 // pred_check_branch
      %64 = sbr.rel (0) target = $region25
    $region24: #{tpu_custom_call.1} parent=1 // pred_region
      _
    $region25: #{tpu_custom_call.1} parent=1 // pred_fallthru
      _
    // Predicated region
    $region26: #{tpu_custom_call.1} parent=1 // pred_check
      _
    $region27: #{tpu_custom_call.1} parent=1 // pred_check_branch
      %66 = sbr.rel (0) target = $region29
    $region28: #{tpu_custom_call.1} parent=1 // pred_region
      _
    $region29: #{tpu_custom_call.1} parent=1 // pred_fallthru
      _
    // Predicated region
    $region30: #{tpu_custom_call.1} parent=1 // pred_check
      _
    $region31: #{tpu_custom_call.1} parent=1 // pred_check_branch
      %68 = sbr.rel (0) target = $region33
    $region32: #{tpu_custom_call.1} parent=1 // pred_region
      %s70 = ssub.s32 256, 256
      %71 = vsyncadd [#allocation3], %s70
      %s72 = sshll.u32 [#allocation13], 4
      %s73 = int_to_ptr.vmem [resolvable:$true] %s72
      %78 = dma.hbm_to_vmem [thread:$0]  %s7, 256, %s73, [#allocation3], 128, 128, 8
    $region33: #{tpu_custom_call.1} parent=1 // pred_fallthru
      _
    // Predicated region
    $region34: #{tpu_custom_call.1} parent=1 // pred_check
      _
    $region35: #{tpu_custom_call.1} parent=1 // pred_check_branch
      %80 = sbr.rel (0) target = $region37
    $region36: #{tpu_custom_call.1} parent=1 // pred_region
      %81 = dma.done [#allocation5], 16
    $region37: #{tpu_custom_call.1} parent=1 // pred_fallthru
      _
    // Predicated region
    $region38: #{tpu_custom_call.1} parent=1 // pred_check
      _
    $region39: #{tpu_custom_call.1} parent=1 // pred_check_branch
      %83 = sbr.rel (0) target = $region41
    $region40: #{tpu_custom_call.1} parent=1 // pred_region
      %84 = dma.done [#allocation6], 16
    $region41: #{tpu_custom_call.1} parent=1 // pred_fallthru
      _
    // Predicated region
    $region42: #{tpu_custom_call.1} parent=1 // pred_check
      _
    $region43: #{tpu_custom_call.1} parent=1 // pred_check_branch
      %86 = sbr.rel (0) target = $region45
    $region44: #{tpu_custom_call.1} parent=1 // pred_region
      %87 = dma.done [#allocation9], 16
    $region45: #{tpu_custom_call.1} parent=1 // pred_fallthru
      _
    // Predicated region
    $region46: #{tpu_custom_call.1} parent=1 // pred_check
      _
    $region47: #{tpu_custom_call.1} parent=1 // pred_check_branch
      %89 = sbr.rel (0) target = $region49
    $region48: #{tpu_custom_call.1} parent=1 // pred_region
      %90 = dma.done [#allocation9], 16
    $region49: #{tpu_custom_call.1} parent=1 // pred_fallthru
      _
    // Predicated region
    $region50: #{tpu_custom_call.1} parent=1 // pred_check
      _
    $region51: #{tpu_custom_call.1} parent=1 // pred_check_branch
      %92 = sbr.rel (0) target = $region53
    $region52: #{tpu_custom_call.1} parent=1 // pred_region
      %93 = dma.done [#allocation12], 16
    $region53: #{tpu_custom_call.1} parent=1 // pred_fallthru
      _
    // Predicated region
    $region54: #{tpu_custom_call.1} parent=1 // pred_check
      _
    $region55: #{tpu_custom_call.1} parent=1 // pred_check_branch
      %95 = sbr.rel (0) target = $region57
    $region56: #{tpu_custom_call.1} parent=1 // pred_region
      %96 = dma.done [#allocation3], 256
    $region57: #{tpu_custom_call.1} parent=1 // pred_fallthru
      _
    %97 = sfence
    %s98 = smul.u32 0, 2
    %v99 = vld [vmem:[#allocation13] sm:$0xff]
    %s100 = sld [smem:[#allocation2 + %s98]]
    %s101 = sld [smem:[#allocation7 + %s98]]
    %s102 = sld [smem:[#allocation8 + %s98]]
    %v104 = vcombine.high %v99, %v99
    %vm106 = vcmask 1043456
    %v107 = vsel %vm106, %v99, 0.0
    %v108 = vrot.slane %v107, 4
    %v109 = vadd.f32 %v107, %v108
    %v110 = vrot.slane %v109, 2
    %v111 = vadd.f32 %v109, %v110
    %v112 = vrot.slane %v111, 1
    %v113 = vadd.f32 %v111, %v112
    %v114 = vsel %vm106, %v104, 0.0
    %v115 = vrot.slane %v114, 4
    %v116 = vadd.f32 %v114, %v115
    %v117 = vrot.slane %v116, 2
    %v118 = vadd.f32 %v116, %v117
    %v119 = vrot.slane %v118, 1
    %v120 = vadd.f32 %v118, %v119
    %v121 = vrcp.pop 4.0
    %v122 = vmul.f32 %v113, %v121
    %v123 = vmul.f32 %v120, %v121
    %v124 = vstv %s100
    %v125 = vadd.f32 %v122, %v124
    %v126 = vadd.f32 %v123, %v124
    %vm127 = vcmask 1040384
    %v128 = vsel %vm127, %v125, 0.0
    %v129 = vsel %vm127, %v126, 0.0
    %v130 = vadd.f32 %v128, %v129
    %131 = vadd.xlane.f32.xlu0 %v130
    %v132 = vpop.xlane.xlu0 %131
    %v133 = vrot.slane %v132, 4
    %v134 = vadd.f32 %v132, %v133
    %v135 = vrot.slane %v134, 2
    %v136 = vadd.f32 %v134, %v135
    %v137 = vrot.slane %v136, 1
    %v138 = vadd.f32 %v136, %v137
    %s139 = vtos %v138
    %v140 = vrcp.pop 256.0
    %s141 = vtos %v140
    %s142 = smul.f32 %s139, %s141
    %v143 = vstv %s142
    %v144 = vsub.f32 %v125, %v143
    %v145 = vsub.f32 %v126, %v143
    %v146 = vstv %s101
    %v147 = vmul.f32 %v144, %v146
    %v148 = vmul.f32 %v145, %v146
    %v149 = vadd.f32 %v147, %v143
    %v150 = vadd.f32 %v148, %v143
    %s151 = smul.f32 %s101, %s102
    %s152 = ssub.f32 1.0, %s101
    %s153 = smul.f32 %s142, %s152
    %v154 = vstv %s153
    %v155 = vsub.f32 %v154, %v149
    %v156 = vsub.f32 %v154, %v150
    %v157 = vstv %s102
    %v158 = vmul.f32 %v155, %v157
    %v159 = vmul.f32 %v156, %v157
    %v160 = vadd.f32 %v158, %v149
    %v161 = vadd.f32 %v159, %v150
    %s162 = smul.f32 %s100, %s151
    %v163 = vstv %s162
    %v164 = vadd.f32 %v160, %v163
    %v165 = vadd.f32 %v161, %v163
    %v166 = vstv %s151
    %v167 = vmul.f32 %v99, %v166
    %v170 = vcombine.low %v164, %v165
    %v172 = vadd.f32 %v167, %v170
    %s173 = sld [smem:[#allocation10 + %s98]]
    %s174 = ssub.s32 %s173, 1
    %s175 = sld [smem:[#allocation11 + %s98]]
    %s176 = ssub.s32 %s175, 1
    %s177 = smul.u32 %s174, 16
    %s178 = sadd.s32 %s176, %s177
    %s179 = ssub.s32 0, %s178
    %p180 = scmp.lt.s32.totalorder %s179, 0
    %s181 = ssub.s32 0, %s179
    %s182 = scalar_select %p180, %s181, %s179
    %s183 = sand.u32 %s182, 255
    %s184 = ssub.s32 0, %s183
    %s185 = scalar_select %p180, %s184, %s183
    %p186 = scmp.ne.s32.totalorder %s185, 0
    %p187 = scmp.lt.s32.totalorder %s185, 0
    %p188 = pnand %p187, %p186
    %p189 = pneg %p188
    %s190 = sadd.s32 %s185, 256
    %s191 = scalar_select %p189, %s190, %s185
    %v193 = vcombine.high %v172, %v172
    %s195 = sand.u32 %s191, 255
    %s196 = sand.u32 %s195, 127
    %s197 = sshrl.u32 %s195, 7
    %198 = vrot.lane.b32.xlu0 %v172, %s196
    %v199 = vpop.permute.xlu0 %198
    %200 = vrot.lane.b32.xlu0 %v193, %s196
    %v201 = vpop.permute.xlu0 %200
    %v202 = vstv %s196
    %v203 = vlaneseq
    %v204 = vand.u32 %v203, 127
    %vm205 = vcmp.lt.s32.totalorder %v204, %v202
    %v206 = vsel %vm205, %v199, %v201
    %v207 = vsel %vm205, %v201, %v199
    %s208 = sand.u32 %s197, 1
    %v209 = vstv %s208
    %vm210 = vcmp.ne.s32.totalorder %v209, 0
    %v211 = vsel %vm210, %v206, %v207
    %v212 = vsel %vm210, %v207, %v206
    %v213 = vld [vmem:[%s5] sm:$0x3]
    %v214 = vstv %s174
    %v215 = vadd.s32 %v213, %v214
    %v216 = vld [vmem:[%s6] sm:$0x3]
    %v217 = vstv %s176
    %v218 = vadd.s32 %v216, %v217
    %vm219 = vcmp.ge.s32.totalorder %v215, 0
    %vm220 = vcmp.lt.s32.totalorder %v215, 16
    %vm221 = vmand %vm219, %vm220
    %vm222 = vcmp.ge.s32.totalorder %v218, 0
    %vm223 = vmand %vm221, %vm222
    %vm224 = vcmp.lt.s32.totalorder %v218, 16
    %vm225 = vmand %vm223, %vm224
    %v226 = vsel %vm225, 1, 0
    %v227 = vlaneseq
    %v228 = vshrl.u32 %v227, 7
    %v229 = vsub.s32 0, %v228
    %v230 = vrot.slane %v226, %v229
    %v231 = vlaneseq
    %v232 = vshrl.u32 %v231, 7
    %v233 = vsub.s32 1, %v232
    %v234 = vrot.slane %v226, %v233
    %vm235 = vcmp.eq.s32.totalorder %v230, 1
    %vm236 = vcmp.eq.s32.totalorder %v234, 1
    %v237 = vsel %vm235, %v211, 0.0
    %v238 = vsel %vm236, %v212, 0.0
    %v241 = vcombine.low %v237, %v238
    %243 = vst [vmem:[#allocation14] sm:$0xff] %v241
    %s244 = sadd.s32 %s98, 1
    %s245 = scalar_lea.vmem [#allocation13], 8
    %v246 = vld [vmem:[%s245] sm:$0xff]
    %s247 = sld [smem:[#allocation2 + %s244]]
    %s248 = sld [smem:[#allocation7 + %s244]]
    %s249 = sld [smem:[#allocation8 + %s244]]
    %v251 = vcombine.high %v246, %v246
    %v253 = vsel %vm106, %v246, 0.0
    %v254 = vrot.slane %v253, 4
    %v255 = vadd.f32 %v253, %v254
    %v256 = vrot.slane %v255, 2
    %v257 = vadd.f32 %v255, %v256
    %v258 = vrot.slane %v257, 1
    %v259 = vadd.f32 %v257, %v258
    %v260 = vsel %vm106, %v251, 0.0
    %v261 = vrot.slane %v260, 4
    %v262 = vadd.f32 %v260, %v261
    %v263 = vrot.slane %v262, 2
    %v264 = vadd.f32 %v262, %v263
    %v265 = vrot.slane %v264, 1
    %v266 = vadd.f32 %v264, %v265
    %v267 = vmul.f32 %v259, %v121
    %v268 = vmul.f32 %v266, %v121
    %v269 = vstv %s247
    %v270 = vadd.f32 %v267, %v269
    %v271 = vadd.f32 %v268, %v269
    %v272 = vsel %vm127, %v270, 0.0
    %v273 = vsel %vm127, %v271, 0.0
    %v274 = vadd.f32 %v272, %v273
    %275 = vadd.xlane.f32.xlu0 %v274
    %v276 = vpop.xlane.xlu0 %275
    %v277 = vrot.slane %v276, 4
    %v278 = vadd.f32 %v276, %v277
    %v279 = vrot.slane %v278, 2
    %v280 = vadd.f32 %v278, %v279
    %v281 = vrot.slane %v280, 1
    %v282 = vadd.f32 %v280, %v281
    %s283 = vtos %v282
    %v284 = vrcp.pop 256.0
    %s285 = vtos %v284
    %s286 = smul.f32 %s283, %s285
    %v287 = vstv %s286
    %v288 = vsub.f32 %v270, %v287
    %v289 = vsub.f32 %v271, %v287
    %v290 = vstv %s248
    %v291 = vmul.f32 %v288, %v290
    %v292 = vmul.f32 %v289, %v290
    %v293 = vadd.f32 %v291, %v287
    %v294 = vadd.f32 %v292, %v287
    %s295 = smul.f32 %s248, %s249
    %s296 = ssub.f32 1.0, %s248
    %s297 = smul.f32 %s286, %s296
    %v298 = vstv %s297
    %v299 = vsub.f32 %v298, %v293
    %v300 = vsub.f32 %v298, %v294
    %v301 = vstv %s249
    %v302 = vmul.f32 %v299, %v301
    %v303 = vmul.f32 %v300, %v301
    %v304 = vadd.f32 %v302, %v293
    %v305 = vadd.f32 %v303, %v294
    %s306 = smul.f32 %s247, %s295
    %v307 = vstv %s306
    %v308 = vadd.f32 %v304, %v307
    %v309 = vadd.f32 %v305, %v307
    %v310 = vstv %s295
    %v311 = vmul.f32 %v246, %v310
    %v314 = vcombine.low %v308, %v309
    %v316 = vadd.f32 %v311, %v314
    %s317 = sld [smem:[#allocation10 + %s244]]
    %s318 = ssub.s32 %s317, 1
    %s319 = sld [smem:[#allocation11 + %s244]]
    %s320 = ssub.s32 %s319, 1
    %s321 = smul.u32 %s318, 16
    %s322 = sadd.s32 %s320, %s321
    %s323 = ssub.s32 0, %s322
    %p324 = scmp.lt.s32.totalorder %s323, 0
    %s325 = ssub.s32 0, %s323
    %s326 = scalar_select %p324, %s325, %s323
    %s327 = sand.u32 %s326, 255
    %s328 = ssub.s32 0, %s327
    %s329 = scalar_select %p324, %s328, %s327
    %p330 = scmp.ne.s32.totalorder %s329, 0
    %p331 = scmp.lt.s32.totalorder %s329, 0
    %p332 = pnand %p331, %p330
    %p333 = pneg %p332
    %s334 = sadd.s32 %s329, 256
    %s335 = scalar_select %p333, %s334, %s329
    %v337 = vcombine.high %v316, %v316
    %s339 = sand.u32 %s335, 255
    %s340 = sand.u32 %s339, 127
    %s341 = sshrl.u32 %s339, 7
    %342 = vrot.lane.b32.xlu0 %v316, %s340
    %v343 = vpop.permute.xlu0 %342
    %344 = vrot.lane.b32.xlu0 %v337, %s340
    %v345 = vpop.permute.xlu0 %344
    %v346 = vstv %s340
    %vm347 = vcmp.lt.s32.totalorder %v204, %v346
    %v348 = vsel %vm347, %v343, %v345
    %v349 = vsel %vm347, %v345, %v343
    %s350 = sand.u32 %s341, 1
    %v351 = vstv %s350
    %vm352 = vcmp.ne.s32.totalorder %v351, 0
    %v353 = vsel %vm352, %v348, %v349
    %v354 = vsel %vm352, %v349, %v348
    %v355 = vld [vmem:[%s5] sm:$0x3]
    %v356 = vstv %s318
    %v357 = vadd.s32 %v355, %v356
    %v358 = vld [vmem:[%s6] sm:$0x3]
    %v359 = vstv %s320
    %v360 = vadd.s32 %v358, %v359
    %vm361 = vcmp.ge.s32.totalorder %v357, 0
    %vm362 = vcmp.lt.s32.totalorder %v357, 16
    %vm363 = vmand %vm361, %vm362
    %vm364 = vcmp.ge.s32.totalorder %v360, 0
    %vm365 = vmand %vm363, %vm364
    %vm366 = vcmp.lt.s32.totalorder %v360, 16
    %vm367 = vmand %vm365, %vm366
    %v368 = vsel %vm367, 1, 0
    %v369 = vlaneseq
    %v370 = vshrl.u32 %v369, 7
    %v371 = vsub.s32 0, %v370
    %v372 = vrot.slane %v368, %v371
    %v373 = vlaneseq
    %v374 = vshrl.u32 %v373, 7
    %v375 = vsub.s32 1, %v374
    %v376 = vrot.slane %v368, %v375
    %vm377 = vcmp.eq.s32.totalorder %v372, 1
    %vm378 = vcmp.eq.s32.totalorder %v376, 1
    %v379 = vsel %vm377, %v353, 0.0
    %v380 = vsel %vm378, %v354, 0.0
    %v383 = vcombine.low %v379, %v380
    %s385 = scalar_lea.vmem [#allocation14], 8
    %386 = vst [vmem:[%s385] sm:$0xff] %v383
    // Predicated region
    $region58: #{tpu_custom_call.1} parent=1 // pred_check
      _
    $region59: #{tpu_custom_call.1} parent=1 // pred_check_branch
      %388 = sbr.rel (0) target = $region61
    $region60: #{tpu_custom_call.1} parent=1 // pred_region
      %s390 = ssub.s32 256, 256
      %391 = vsyncadd [#allocation4], %s390
      %s392 = sshll.u32 [#allocation14], 4
      %s393 = int_to_ptr.vmem [resolvable:$true] %s392
      %398 = dma.vmem_to_hbm [thread:$0]  %s393, 256, %s8, [#allocation4], 128, 128, 8
    $region61: #{tpu_custom_call.1} parent=1 // pred_fallthru
      _
    // Predicated region
    $region62: #{tpu_custom_call.1} parent=1 // pred_check
      _
    $region63: #{tpu_custom_call.1} parent=1 // pred_check_branch
      %400 = sbr.rel (0) target = $region65
    $region64: #{tpu_custom_call.1} parent=1 // pred_region
      %401 = dma.done [#allocation4], 256
    $region65: #{tpu_custom_call.1} parent=1 // pred_fallthru
      _
    %402 = vsyncpa [#allocation3], 1
    %403 = vsyncpa [#allocation4], 1
    %404 = vsyncpa [#allocation5], 1
    %405 = vsyncpa [#allocation9], 1
    %406 = vsyncpa [#allocation6], 1
    %407 = vsyncpa [#allocation12], 1

</llo_original>
